<compile_context>
chip_gen: v5e
topology: v5e:2x2
jax: 0.10.0
libtpu: 0.0.40
codegen_flags: <defaults>
</compile_context>

<pallas_src>
import jax
import jax.numpy as jnp
from jax.experimental import pallas as pl
from jax.experimental.pallas import tpu as pltpu


# ---------------------------------------------------------------------------
# Kernel (one grid step == one recurrent timestep)
# ---------------------------------------------------------------------------
def lstm_kernel(hc0_ref, xs_ref, w_ref, b_ref, y_ref, hc_ref):
    H = hc0_ref.shape[-1] // 4
    t = pl.program_id(0)

    # Initialize the resident carry block from the initial state on the first step only.
    @pl.when(t == 0)
    def _():
        hc_ref[...] = hc0_ref[...]

    hc = hc_ref[...]                          # (B, 4H) = [h1 | h2 | c1 | c2]
    h1p = hc[:, 0 * H:1 * H]
    h2p = hc[:, 1 * H:2 * H]
    c1p = hc[:, 2 * H:3 * H]
    c2p = hc[:, 3 * H:4 * H]

    x = xs_ref[...]                           # (B, H): x_t zero-padded to H lanes

    # Static views into the packed slabs (zero runtime cost, sublane-aligned offsets).
    w1 = w_ref[0 * H:2 * H, :]                # (2H, 4H): [w_hh1 ; w_inp@w_ih1 ; 0-pad]
    w2 = w_ref[2 * H:4 * H, :]                # (2H, 4H): [w_hh2 ; w_ih2]
    wo = w_ref[4 * H:5 * H, :]                # (H, 4H):  [w_out | 0-pad lanes]
    b1 = b_ref[:, 0 * H:4 * H]
    b2 = b_ref[:, 4 * H:8 * H]
    bo = b_ref[:, 8 * H:12 * H]

    def cell(gates, c_prev):
        # One wide sigmoid covers the i/f/o lanes; only g needs a (narrow) tanh.
        sg = jax.nn.sigmoid(gates)                        # (B, 4H)
        g = jnp.tanh(gates[:, 2 * H:3 * H])               # (B, H)
        i = sg[:, 0 * H:1 * H]
        f = sg[:, 1 * H:2 * H]
        o = sg[:, 3 * H:4 * H]
        c = f * c_prev + i * g
        h = o * jnp.tanh(c)
        return h, c

    # --- layer 1: input Linear folded into W_ih, ih/hh fused into one MXU dot ---
    xh1 = jnp.concatenate([h1p, x], axis=-1)              # (B, 2H)
    g1 = jnp.dot(xh1, w1, preferred_element_type=jnp.float32) + b1
    h1, c1 = cell(g1, c1p)

    # --- layer 2: ih/hh fused via one lane concat ---
    xh2 = jnp.concatenate([h2p, h1], axis=-1)             # (B, 2H)
    g2 = jnp.dot(xh2, w2, preferred_element_type=jnp.float32) + b2
    h2, c2 = cell(g2, c2p)

    # --- output projection + ReLU: one lane-dense unmasked (B, 4H) store per step ---
    y = jnp.dot(h2, wo, preferred_element_type=jnp.float32) + bo
    y_ref[...] = jnp.maximum(y, 0.0)

    # --- carry / final state: single full-width (B, 4H) store ---
    hc_ref[...] = jnp.concatenate([h1, h2, c1, c2], axis=-1)


# ---------------------------------------------------------------------------
# Host-side weight preparation (one-time, outside the per-step path)
# ---------------------------------------------------------------------------
def fold_params(p):
    """Fold the input Linear into layer-1's W_ih and pack everything into two slabs."""
    H = p["w_ih1"].shape[0]
    I = p["w_inp"].shape[0]
    O = p["w_out"].shape[1]
    assert I <= H and O <= 4 * H, "padding scheme assumes inputs <= H and outputs <= 4H"

    w1x = p["w_inp"] @ p["w_ih1"]                                   # (I, 4H)
    w1 = jnp.zeros((2 * H, 4 * H), jnp.float32)
    w1 = w1.at[0:H].set(p["w_hh1"]).at[H:H + I].set(w1x)            # rows [H+I:2H] stay 0
    w2 = jnp.concatenate([p["w_hh2"], p["w_ih2"]], axis=0)          # (2H, 4H)
    wo = jnp.zeros((H, 4 * H), jnp.float32).at[:, :O].set(p["w_out"])

    b1 = p["b_inp"] @ p["w_ih1"] + p["b1"]                          # (1, 4H)
    bo = jnp.zeros((1, 4 * H), jnp.float32).at[:, :O].set(p["b_out"])

    return {
        "w": jnp.concatenate([w1, w2, wo], axis=0),                 # (5H, 4H) = (160, 128)
        "b": jnp.concatenate([b1, p["b2"], bo], axis=-1),           # (1, 12H) = (1, 384)
    }


# ---------------------------------------------------------------------------
# Forward wrappers
# ---------------------------------------------------------------------------
def lstm_forward_seq(xs, kp, hidden=None, *, out_dim):
    """xs: (T, B, inputs) f32.  Runs T recurrent steps inside ONE pallas_call."""
    T, B, I = xs.shape
    H = kp["w"].shape[1] // 4

    if hidden is None:
        hc0 = jnp.zeros((B, 4 * H), jnp.float32)
    else:
        h0, c0 = hidden
        hc0 = jnp.concatenate([h0[0], h0[1], c0[0], c0[1]], axis=-1)

    # Pad x_t to H lanes so the fused layer-1 input [h1_prev | x_pad] is exactly 2H wide.
    xs_pad = jnp.zeros((T, B, H), jnp.float32).at[:, :, :I].set(xs)

    flops = int(T * (2 * B * (2 * H) * (4 * H) * 2 + 2 * B * H * (4 * H) + 10 * B * H))
    transcendentals = int(T * (2 * B * 4 * H + 4 * B * H))
    bytes_accessed = int(4 * (kp["w"].size + kp["b"].size + hc0.size
                              + xs_pad.size + T * B * 4 * H + B * 4 * H))

    y_pad, hc = pl.pallas_call(
        lstm_kernel,
        out_shape=(jax.ShapeDtypeStruct((T, B, 4 * H), jnp.float32),
                   jax.ShapeDtypeStruct((B, 4 * H), jnp.float32)),
        grid=(T,),
        in_specs=[
            pl.BlockSpec((B, 4 * H), lambda t: (0, 0)),            # hc0       (resident)
            pl.BlockSpec((None, B, H), lambda t: (t, 0, 0)),       # x_t       (streamed)
            pl.BlockSpec((5 * H, 4 * H), lambda t: (0, 0)),        # W slab    (resident)
            pl.BlockSpec((1, 12 * H), lambda t: (0, 0)),           # bias slab (resident)
        ],
        out_specs=(
            pl.BlockSpec((None, B, 4 * H), lambda t: (t, 0, 0)),   # y_t padded (streamed)
            pl.BlockSpec((B, 4 * H), lambda t: (0, 0)),            # carried / final state
        ),
        input_output_aliases={0: 1},            # write the new [h|c] slab over the old one
        compiler_params=pltpu.CompilerParams(
            dimension_semantics=("arbitrary",),                    # sequential recurrence
            vmem_limit_bytes=1 * 1024 * 1024,
        ),
        cost_estimate=pl.CostEstimate(flops=flops,
                                      transcendentals=transcendentals,
                                      bytes_accessed=bytes_accessed),
    )(hc0, xs_pad, kp["w"], kp["b"])

    y = y_pad[:, :, :out_dim]
    h_n = jnp.stack([hc[:, 0 * H:1 * H], hc[:, 1 * H:2 * H]])
    c_n = jnp.stack([hc[:, 2 * H:3 * H], hc[:, 3 * H:4 * H]])
    return y, (h_n, c_n)


def lstm_forward(x, kp, hidden=None, *, out_dim):
    """Single step, matching LSTM.forward(inputs, hidden): x (B, I) -> (y (B, O), (h, c))."""
    y, hidden = lstm_forward_seq(x[None], kp, hidden, out_dim=out_dim)
    return y[0], hidden


# ---------------------------------------------------------------------------
# PyTorch-style parameter init (raw, unfolded — matches the nn.Module layout)
# ---------------------------------------------------------------------------
def init_params(key, inputs, hidden_size, outputs):
    ks = jax.random.split(key, 12)
    H = hidden_size

    def unif(k, shape, fan_in):
        bound = 1.0 / jnp.sqrt(fan_in)
        return jax.random.uniform(k, shape, jnp.float32, -bound, bound)

    return {
        # nn.Linear(inputs, H): weight (H, inputs) -> stored transposed (inputs, H)
        "w_inp": unif(ks[0], (inputs, H), inputs),
        "b_inp": unif(ks[1], (1, H), inputs),
        # nn.LSTM layer 0: W_ih/W_hh (4H, H) -> stored transposed (H, 4H); gate order [i,f,g,o]
        "w_ih1": unif(ks[2], (H, 4 * H), H),
        "w_hh1": unif(ks[3], (H, 4 * H), H),
        "b1": unif(ks[4], (1, 4 * H), H) + unif(ks[5], (1, 4 * H), H),   # b_ih + b_hh
        # nn.LSTM layer 1
        "w_ih2": unif(ks[6], (H, 4 * H), H),
        "w_hh2": unif(ks[7], (H, 4 * H), H),
        "b2": unif(ks[8], (1, 4 * H), H) + unif(ks[9], (1, 4 * H), H),
        # nn.Linear(H, outputs): stored transposed (H, outputs)
        "w_out": unif(ks[10], (H, outputs), H),
        "b_out": unif(ks[11], (1, outputs), H),
    }


# ---------------------------------------------------------------------------
# Pure-JAX reference (un-folded, mirrors PyTorch math exactly)
# ---------------------------------------------------------------------------
def lstm_forward_ref(x, params, hidden=None):
    B = x.shape[0]
    H = params["w_inp"].shape[1]
    if hidden is None:
        h0 = jnp.zeros((2, B, H), jnp.float32)
        c0 = jnp.zeros((2, B, H), jnp.float32)
    else:
        h0, c0 = hidden

    xl = x @ params["w_inp"] + params["b_inp"]

    def cell(inp, h, c, w_ih, w_hh, b):
        g = inp @ w_ih + h @ w_hh + b
        i = jax.nn.sigmoid(g[:, 0 * H:1 * H])
        f = jax.nn.sigmoid(g[:, 1 * H:2 * H])
        gg = jnp.tanh(g[:, 2 * H:3 * H])
        o = jax.nn.sigmoid(g[:, 3 * H:4 * H])
        c_new = f * c + i * gg
        h_new = o * jnp.tanh(c_new)
        return h_new, c_new

    h1, c1 = cell(xl, h0[0], c0[0], params["w_ih1"], params["w_hh1"], params["b1"])
    h2, c2 = cell(h1, h0[1], c0[1], params["w_ih2"], params["w_hh2"], params["b2"])
    y = jnp.maximum(h2 @ params["w_out"] + params["b_out"], 0.0)
    return y, (jnp.stack([h1, h2]), jnp.stack([c1, c2]))


if __name__ == "__main__":
    B, INPUTS, HIDDEN, OUTPUTS, T = 2, 4, 32, 8, 8

    key = jax.random.PRNGKey(0)
    k_x, k_xs, k_p = jax.random.split(key, 3)
    x = jax.random.normal(k_x, (B, INPUTS), jnp.float32)
    xs = jax.random.normal(k_xs, (T, B, INPUTS), jnp.float32)
    params = init_params(k_p, INPUTS, HIDDEN, OUTPUTS)
    kparams = fold_params(params)            # one-time host-side weight packing

    fwd = jax.jit(lstm_forward, static_argnames=("out_dim",))
    fwd_seq = jax.jit(lstm_forward_seq, static_argnames=("out_dim",))

    # --- single-step semantics of the nn.Module forward (zero initial hidden) ---
    y, (h_n, c_n) = fwd(x, kparams, None, out_dim=OUTPUTS)
    jax.block_until_ready((y, h_n, c_n))
    y_r, (h_r, c_r) = lstm_forward_ref(x, params)
    assert y.shape == (B, OUTPUTS)
    assert h_n.shape == (2, B, HIDDEN) and c_n.shape == (2, B, HIDDEN)
    assert jnp.allclose(y, y_r, atol=1e-5, rtol=1e-5)
    assert jnp.allclose(h_n, h_r, atol=1e-5, rtol=1e-5)
    assert jnp.allclose(c_n, c_r, atol=1e-5, rtol=1e-5)

    # --- feed the hidden state back in (exercises the non-zero hidden path) ---
    y2, (h2_n, c2_n) = fwd(x, kparams, (h_n, c_n), out_dim=OUTPUTS)
    jax.block_until_ready((y2, h2_n, c2_n))
    y2_r, (h2_r, c2_r) = lstm_forward_ref(x, params, (h_r, c_r))
    assert jnp.allclose(y2, y2_r, atol=1e-5, rtol=1e-5)
    assert jnp.allclose(h2_n, h2_r, atol=1e-5, rtol=1e-5)
    assert jnp.allclose(c2_n, c2_r, atol=1e-5, rtol=1e-5)

    # --- decode-style path: T recurrent steps in ONE kernel launch, weights resident ---
    ys, (hs_n, cs_n) = fwd_seq(xs, kparams, None, out_dim=OUTPUTS)
    jax.block_until_ready((ys, hs_n, cs_n))
    hid_r = None
    ys_r = []
    for t in range(T):
        y_t, hid_r = lstm_forward_ref(xs[t], params, hid_r)
        ys_r.append(y_t)
    ys_r = jnp.stack(ys_r)
    assert ys.shape == (T, B, OUTPUTS)
    assert jnp.allclose(ys, ys_r, atol=1e-4, rtol=1e-4)
    assert jnp.allclose(hs_n, hid_r[0], atol=1e-4, rtol=1e-4)
    assert jnp.allclose(cs_n, hid_r[1], atol=1e-4, rtol=1e-4)

    print("KERNEL_OK")
</pallas_src>

<mosaic_0001>
module attributes {stable_mosaic.version = 11 : i64} {
  func.func @lstm_kernel(%arg0: i32, %arg1: memref<2x128xf32, #tpu.memory_space<vmem>>, %arg2: memref<1x2x32xf32, #tpu.memory_space<vmem>>, %arg3: memref<160x128xf32, #tpu.memory_space<vmem>>, %arg4: memref<1x384xf32, #tpu.memory_space<vmem>>, %arg5: memref<1x2x128xf32, #tpu.memory_space<vmem>>, %arg6: memref<2x128xf32, #tpu.memory_space<vmem>>) attributes {dimension_semantics = [#tpu.dimension_semantics<arbitrary>], iteration_bounds = array<i64: 1>, scalar_prefetch = 0 : i64, scratch_operands = 0 : i64, tpu.core_type = #tpu.core_type<tc>, window_params = [{pipeline_mode = #tpu.pipeline_mode<synchronous>, transform_indices = @transform_0, window_bounds = array<i64: 2, 128>}, {transform_indices = @transform_1, window_bounds = array<i64: 1, 2, 32>}, {pipeline_mode = #tpu.pipeline_mode<synchronous>, transform_indices = @transform_2, window_bounds = array<i64: 160, 128>}, {pipeline_mode = #tpu.pipeline_mode<synchronous>, transform_indices = @transform_3, window_bounds = array<i64: 1, 384>}, {transform_indices = @transform_4, window_bounds = array<i64: 1, 2, 128>}, {pipeline_mode = #tpu.pipeline_mode<synchronous>, transform_indices = @transform_5, window_bounds = array<i64: 2, 128>}]} {
    %c0_i32 = arith.constant 0 : i32
    %0 = arith.cmpi eq, %arg0, %c0_i32 : i32
    %1 = arith.extui %0 : i1 to i32
    %c0_i32_0 = arith.constant 0 : i32
    %2 = arith.cmpi ne, %1, %c0_i32_0 : i32
    scf.if %2 {
      %c0_24 = arith.constant 0 : index
      %c0_25 = arith.constant 0 : index
      %64 = vector.load %arg1[%c0_24, %c0_25] : memref<2x128xf32, #tpu.memory_space<vmem>>, vector<2x128xf32>
      %c0_26 = arith.constant 0 : index
      %c0_27 = arith.constant 0 : index
      %65 = vector.load %arg6[%c0_26, %c0_27] : memref<2x128xf32, #tpu.memory_space<vmem>>, vector<2x128xf32>
      tpu.vector_store %arg6[%c0_26, %c0_27], %64 {strides = array<i32>} : memref<2x128xf32, #tpu.memory_space<vmem>>, vector<2x128xf32>,
    } else {
    }
    %c0 = arith.constant 0 : index
    %c0_1 = arith.constant 0 : index
    %3 = vector.load %arg6[%c0, %c0_1] : memref<2x128xf32, #tpu.memory_space<vmem>>, vector<2x128xf32>
    %4 = vector.extract_strided_slice %3 {offsets = [0, 0], sizes = [2, 32], strides = [1, 1]} : vector<2x128xf32> to vector<2x32xf32>
    %5 = vector.extract_strided_slice %3 {offsets = [0, 32], sizes = [2, 32], strides = [1, 1]} : vector<2x128xf32> to vector<2x32xf32>
    %6 = vector.extract_strided_slice %3 {offsets = [0, 64], sizes = [2, 32], strides = [1, 1]} : vector<2x128xf32> to vector<2x32xf32>
    %7 = vector.extract_strided_slice %3 {offsets = [0, 96], sizes = [2, 32], strides = [1, 1]} : vector<2x128xf32> to vector<2x32xf32>
    %c0_2 = arith.constant 0 : index
    %c0_3 = arith.constant 0 : index
    %c0_4 = arith.constant 0 : index
    %8 = vector.load %arg2[%c0_2, %c0_3, %c0_4] : memref<1x2x32xf32, #tpu.memory_space<vmem>>, vector<1x2x32xf32>
    %9 = vector.shape_cast %8 : vector<1x2x32xf32> to vector<2x32xf32>
    %c0_5 = arith.constant 0 : index
    %c0_6 = arith.constant 0 : index
    %10 = vector.load %arg3[%c0_5, %c0_6] : memref<160x128xf32, #tpu.memory_space<vmem>>, vector<64x128xf32>
    %c64 = arith.constant 64 : index
    %c0_7 = arith.constant 0 : index
    %11 = vector.load %arg3[%c64, %c0_7] : memref<160x128xf32, #tpu.memory_space<vmem>>, vector<64x128xf32>
    %c128 = arith.constant 128 : index
    %c0_8 = arith.constant 0 : index
    %12 = vector.load %arg3[%c128, %c0_8] : memref<160x128xf32, #tpu.memory_space<vmem>>, vector<32x128xf32>
    %c0_9 = arith.constant 0 : index
    %c0_10 = arith.constant 0 : index
    %13 = vector.load %arg4[%c0_9, %c0_10] : memref<1x384xf32, #tpu.memory_space<vmem>>, vector<1x128xf32>
    %c0_11 = arith.constant 0 : index
    %c128_12 = arith.constant 128 : index
    %14 = vector.load %arg4[%c0_11, %c128_12] : memref<1x384xf32, #tpu.memory_space<vmem>>, vector<1x128xf32>
    %c0_13 = arith.constant 0 : index
    %c256 = arith.constant 256 : index
    %15 = vector.load %arg4[%c0_13, %c256] : memref<1x384xf32, #tpu.memory_space<vmem>>, vector<1x128xf32>
    %16 = tpu.concatenate %4, %9 in 1 : vector<2x32xf32>, vector<2x32xf32> -> vector<2x64xf32>
    %cst = arith.constant dense<0.000000e+00> : vector<2x128xf32>
    %17 = tpu.matmul %16, %10, %cst {dimension_numbers = #tpu.dot_dimension_numbers<[1], [0], [0], [1], [0, 0, 1, 1], [], []>} : vector<2x64xf32>, vector<64x128xf32>, vector<2x128xf32> -> vector<2x128xf32>
    %18 = vector.broadcast %13 : vector<1x128xf32> to vector<2x128xf32>
    %19 = arith.addf %17, %18 : vector<2x128xf32>
    %20 = arith.negf %19 : vector<2x128xf32>
    %21 = math.exp %20 : vector<2x128xf32>
    %cst_14 = arith.constant 1.000000e+00 : f32
    %22 = vector.broadcast %cst_14 : f32 to vector<2x128xf32>
    %23 = arith.addf %22, %21 : vector<2x128xf32>
    %24 = arith.divf %22, %23 : vector<2x128xf32>
    %25 = vector.extract_strided_slice %19 {offsets = [0, 64], sizes = [2, 32], strides = [1, 1]} : vector<2x128xf32> to vector<2x32xf32>
    %26 = math.tanh %25 : vector<2x32xf32>
    %27 = vector.extract_strided_slice %24 {offsets = [0, 0], sizes = [2, 32], strides = [1, 1]} : vector<2x128xf32> to vector<2x32xf32>
    %28 = vector.extract_strided_slice %24 {offsets = [0, 32], sizes = [2, 32], strides = [1, 1]} : vector<2x128xf32> to vector<2x32xf32>
    %29 = vector.extract_strided_slice %24 {offsets = [0, 96], sizes = [2, 32], strides = [1, 1]} : vector<2x128xf32> to vector<2x32xf32>
    %30 = arith.mulf %28, %6 : vector<2x32xf32>
    %31 = arith.mulf %27, %26 : vector<2x32xf32>
    %32 = arith.addf %30, %31 : vector<2x32xf32>
    %33 = math.tanh %32 : vector<2x32xf32>
    %34 = arith.mulf %29, %33 : vector<2x32xf32>
    %35 = tpu.concatenate %5, %34 in 1 : vector<2x32xf32>, vector<2x32xf32> -> vector<2x64xf32>
    %cst_15 = arith.constant dense<0.000000e+00> : vector<2x128xf32>
    %36 = tpu.matmul %35, %11, %cst_15 {dimension_numbers = #tpu.dot_dimension_numbers<[1], [0], [0], [1], [0, 0, 1, 1], [], []>} : vector<2x64xf32>, vector<64x128xf32>, vector<2x128xf32> -> vector<2x128xf32>
    %37 = vector.broadcast %14 : vector<1x128xf32> to vector<2x128xf32>
    %38 = arith.addf %36, %37 : vector<2x128xf32>
    %39 = arith.negf %38 : vector<2x128xf32>
    %40 = math.exp %39 : vector<2x128xf32>
    %cst_16 = arith.constant 1.000000e+00 : f32
    %41 = vector.broadcast %cst_16 : f32 to vector<2x128xf32>
    %42 = arith.addf %41, %40 : vector<2x128xf32>
    %43 = arith.divf %41, %42 : vector<2x128xf32>
    %44 = vector.extract_strided_slice %38 {offsets = [0, 64], sizes = [2, 32], strides = [1, 1]} : vector<2x128xf32> to vector<2x32xf32>
    %45 = math.tanh %44 : vector<2x32xf32>
    %46 = vector.extract_strided_slice %43 {offsets = [0, 0], sizes = [2, 32], strides = [1, 1]} : vector<2x128xf32> to vector<2x32xf32>
    %47 = vector.extract_strided_slice %43 {offsets = [0, 32], sizes = [2, 32], strides = [1, 1]} : vector<2x128xf32> to vector<2x32xf32>
    %48 = vector.extract_strided_slice %43 {offsets = [0, 96], sizes = [2, 32], strides = [1, 1]} : vector<2x128xf32> to vector<2x32xf32>
    %49 = arith.mulf %47, %7 : vector<2x32xf32>
    %50 = arith.mulf %46, %45 : vector<2x32xf32>
    %51 = arith.addf %49, %50 : vector<2x32xf32>
    %52 = math.tanh %51 : vector<2x32xf32>
    %53 = arith.mulf %48, %52 : vector<2x32xf32>
    %cst_17 = arith.constant dense<0.000000e+00> : vector<2x128xf32>
    %54 = tpu.matmul %53, %12, %cst_17 {dimension_numbers = #tpu.dot_dimension_numbers<[1], [0], [0], [1], [0, 0, 1, 1], [], []>} : vector<2x32xf32>, vector<32x128xf32>, vector<2x128xf32> -> vector<2x128xf32>
    %55 = vector.broadcast %15 : vector<1x128xf32> to vector<2x128xf32>
    %56 = arith.addf %54, %55 : vector<2x128xf32>
    %cst_18 = arith.constant 0.000000e+00 : f32
    %57 = vector.broadcast %cst_18 : f32 to vector<2x128xf32>
    %58 = arith.maximumf %56, %57 : vector<2x128xf32>
    %c0_19 = arith.constant 0 : index
    %c0_20 = arith.constant 0 : index
    %c0_21 = arith.constant 0 : index
    %59 = vector.load %arg5[%c0_19, %c0_20, %c0_21] : memref<1x2x128xf32, #tpu.memory_space<vmem>>, vector<1x2x128xf32>
    %60 = vector.shape_cast %59 : vector<1x2x128xf32> to vector<2x128xf32>
    %61 = vector.shape_cast %58 : vector<2x128xf32> to vector<1x2x128xf32>
    tpu.vector_store %arg5[%c0_19, %c0_20, %c0_21], %61 {strides = array<i32>} : memref<1x2x128xf32, #tpu.memory_space<vmem>>, vector<1x2x128xf32>,
    %62 = tpu.concatenate %34, %53, %32, %51 in 1 : vector<2x32xf32>, vector<2x32xf32>, vector<2x32xf32>, vector<2x32xf32> -> vector<2x128xf32>
    %c0_22 = arith.constant 0 : index
    %c0_23 = arith.constant 0 : index
    %63 = vector.load %arg6[%c0_22, %c0_23] : memref<2x128xf32, #tpu.memory_space<vmem>>, vector<2x128xf32>
    tpu.vector_store %arg6[%c0_22, %c0_23], %62 {strides = array<i32>} : memref<2x128xf32, #tpu.memory_space<vmem>>, vector<2x128xf32>,
    return
  }
  func.func @transform_0(%arg0: i32) -> (i32, i32) {
    %c0_i32 = arith.constant 0 : i32
    %c0_i32_0 = arith.constant 0 : i32
    %c0_i32_1 = arith.constant 0 : i32
    return %c0_i32, %c0_i32_0 : i32, i32
  }
  func.func @transform_1(%arg0: i32) -> (i32, i32, i32) {
    %c0_i32 = arith.constant 0 : i32
    %c0_i32_0 = arith.constant 0 : i32
    %c0_i32_1 = arith.constant 0 : i32
    return %arg0, %c0_i32, %c0_i32_0 : i32, i32, i32
  }
  func.func @transform_2(%arg0: i32) -> (i32, i32) {
    %c0_i32 = arith.constant 0 : i32
    %c0_i32_0 = arith.constant 0 : i32
    %c0_i32_1 = arith.constant 0 : i32
    return %c0_i32, %c0_i32_0 : i32, i32
  }
  func.func @transform_3(%arg0: i32) -> (i32, i32) {
    %c0_i32 = arith.constant 0 : i32
    %c0_i32_0 = arith.constant 0 : i32
    %c0_i32_1 = arith.constant 0 : i32
    return %c0_i32, %c0_i32_0 : i32, i32
  }
  func.func @transform_4(%arg0: i32) -> (i32, i32, i32) {
    %c0_i32 = arith.constant 0 : i32
    %c0_i32_0 = arith.constant 0 : i32
    %c0_i32_1 = arith.constant 0 : i32
    return %arg0, %c0_i32, %c0_i32_0 : i32, i32, i32
  }
  func.func @transform_5(%arg0: i32) -> (i32, i32) {
    %c0_i32 = arith.constant 0 : i32
    %c0_i32_0 = arith.constant 0 : i32
    %c0_i32_1 = arith.constant 0 : i32
    return %c0_i32, %c0_i32_0 : i32, i32
  }
}

</mosaic_0001>

<llo_original>
// kernel: lstm_forward.1
$region0: #{lstm_forward.1}
  #allocation0 [shape = 'u32[]', space=smem, size = 0x4, offset = 0x4, fixed_abs, tag = 'smem constant byte address 0x4 - core index']
  #allocation1 [shape = 'u32[72,128]{1,0:T(1,128)}', space=vmem, size = 0x9000, scoped, tag = 'internal scratch']
  %s0 = inlined_call_operand.vmem [shape: f32[2,128], index: 0, kind: input, shape index: {}, may-alias: {0,5}]
  %s1 = inlined_call_operand.vmem [shape: f32[1,2,32], index: 1, kind: input, shape index: {}]
  %s2 = inlined_call_operand.hbm [shape: f32[160,128], index: 2, kind: input, shape index: {}]
  %s3 = inlined_call_operand.vmem [shape: f32[1,384], index: 3, kind: input, shape index: {}]
  %s4 = inlined_call_operand.vmem [shape: f32[1,2,128], index: 4, kind: output, shape index: {0}]
  %s5 = inlined_call_operand.vmem [shape: f32[2,128], index: 5, kind: output, shape index: {1}, may-alias: {0,5}]
  %6 = xla_tuple %s4, %s5
  %s7 = sld [smem:[#allocation0]]
  $region42: #{lstm_forward.1} parent=0
    _
  %s9 = ssub.s32 1, %s7
  %s10 = scalar_select 0, %s9, %s7
  $region1: #{lstm_forward.1} parent=0
    #allocation2 [shape = 'u8[81920]{0}', space=vmem, size = 0x14000, scoped, tag = 'input window, operand 2, single buffered']
    #allocation3 [shape = 's32[1]{0}', space=sflag, size = 0x4, scoped, tag = 'scoped memory for lstm_forward.1']
    %11 = vsyncpa [#allocation3], 0
    // Predicated region
    $region2: #{lstm_forward.1} parent=1 // pred_check
      _
    $region3: #{lstm_forward.1} parent=1 // pred_check_branch
      %13 = sbr.rel (0) target = $region5
    $region4: #{lstm_forward.1} parent=1 // pred_region
      _
    $region5: #{lstm_forward.1} parent=1 // pred_fallthru
      _
    // Predicated region
    $region6: #{lstm_forward.1} parent=1 // pred_check
      _
    $region7: #{lstm_forward.1} parent=1 // pred_check_branch
      %15 = sbr.rel (0) target = $region9
    $region8: #{lstm_forward.1} parent=1 // pred_region
      _
    $region9: #{lstm_forward.1} parent=1 // pred_fallthru
      _
    // Predicated region
    $region10: #{lstm_forward.1} parent=1 // pred_check
      _
    $region11: #{lstm_forward.1} parent=1 // pred_check_branch
      %17 = sbr.rel (0) target = $region13
    $region12: #{lstm_forward.1} parent=1 // pred_region
      %19 = vsyncadd [#allocation3], 0
      %s20 = sshll.u32 %s2, 4
      %s21 = int_to_ptr.hbm [resolvable:$true] %s20
      %s22 = sshll.u32 [#allocation2], 4
      %s23 = int_to_ptr.vmem [resolvable:$true] %s22
      %28 = dma.hbm_to_vmem [thread:$0]  %s21, 2560, %s23, [#allocation3], 128, 128, 8
    $region13: #{lstm_forward.1} parent=1 // pred_fallthru
      _
    // Predicated region
    $region14: #{lstm_forward.1} parent=1 // pred_check
      _
    $region15: #{lstm_forward.1} parent=1 // pred_check_branch
      %30 = sbr.rel (0) target = $region17
    $region16: #{lstm_forward.1} parent=1 // pred_region
      _
    $region17: #{lstm_forward.1} parent=1 // pred_fallthru
      _
    // Predicated region
    $region18: #{lstm_forward.1} parent=1 // pred_check
      _
    $region19: #{lstm_forward.1} parent=1 // pred_check_branch
      %32 = sbr.rel (0) target = $region21
    $region20: #{lstm_forward.1} parent=1 // pred_region
      %34 = dma.done [#allocation3], 2560
    $region21: #{lstm_forward.1} parent=1 // pred_fallthru
      _
    %p35 = scmp.eq.s32.totalorder 0, 0
    // Predicated region
    $region22: #{lstm_forward.1} parent=1 // pred_check
      %p36 = pneg %p35
    $region23: #{lstm_forward.1} parent=1 // pred_check_branch
      %38 = sbr.rel (%p36) target = $region25
    $region24: #{lstm_forward.1} parent=1 // pred_region
      %v39 = vld [vmem:[%s0] sm:$0x3]
      %40 = vst [vmem:[%s5] sm:$0x3] %v39
    $region25: #{lstm_forward.1} parent=1 // pred_fallthru
      _
    %v41 = vld [vmem:[%s5] sm:$0x3]
    %v42 = vld [vmem:[%s1] sm:$0x3]
    %v43 = vld [vmem:[#allocation2] sm:$0xff]
    %v44 = vld [vmem:[#allocation2 + $0x8] sm:$0xff]
    %v45 = vld [vmem:[#allocation2 + $0x10] sm:$0xff]
    %v46 = vld [vmem:[#allocation2 + $0x18] sm:$0xff]
    %v47 = vld [vmem:[#allocation2 + $0x20] sm:$0xff]
    %v48 = vld [vmem:[#allocation2 + $0x28] sm:$0xff]
    %v49 = vld [vmem:[#allocation2 + $0x30] sm:$0xff]
    %v50 = vld [vmem:[#allocation2 + $0x38] sm:$0xff]
    %v51 = vld [vmem:[#allocation2 + $0x40] sm:$0xff]
    %v52 = vld [vmem:[#allocation2 + $0x48] sm:$0xff]
    %v53 = vld [vmem:[#allocation2 + $0x50] sm:$0xff]
    %v54 = vld [vmem:[#allocation2 + $0x58] sm:$0xff]
    %v55 = vld [vmem:[#allocation2 + $0x60] sm:$0xff]
    %v56 = vld [vmem:[#allocation2 + $0x68] sm:$0xff]
    %v57 = vld [vmem:[#allocation2 + $0x70] sm:$0xff]
    %v58 = vld [vmem:[#allocation2 + $0x78] sm:$0xff]
    %v59 = vld [vmem:[#allocation2 + $0x80] sm:$0xff]
    %v60 = vld [vmem:[#allocation2 + $0x88] sm:$0xff]
    %v61 = vld [vmem:[#allocation2 + $0x90] sm:$0xff]
    %v62 = vld [vmem:[#allocation2 + $0x98] sm:$0xff]
    %v63 = vld [vmem:[%s3] sm:$0x1]
    %v64 = vld [vmem:[%s3 + $0x1] sm:$0x1]
    %v65 = vld [vmem:[%s3 + $0x2] sm:$0x1]
    %67 = vrot.lane.b32.xlu0 %v42, 32
    %v68 = vpop.permute.xlu0 %67
    %vm70 = vcmask 261120
    %v71 = vsel %vm70, %v41, %v68
    %v73 = vperm.slane %v63, 0
    %vm75 = vcmask 523264
    %v77 = vsel %vm75, %v71, 0
    %79 = vmatpush.msra.mxu0 0.0
    %80 = vmatpush.msra.mxu0 0.0
    %81 = vmatpush.msra.mxu0 0.0
    %82 = vmatpush.msra.mxu0 0.0
    %83 = vmatpush.msra.mxu0 0.0
    %84 = vmatpush.msra.mxu0 0.0
    %85 = vmatpush.msra.mxu0 0.0
    %86 = vmatpush.msra.mxu0 0.0
    %87 = vmatpush.msra.mxu0 %v50
    %88 = vmatpush.msra.mxu0 %v49
    %89 = vmatpush.msra.mxu0 %v48
    %90 = vmatpush.msra.mxu0 %v47
    %91 = vmatpush.msra.mxu0 %v46
    %92 = vmatpush.msra.mxu0 %v45
    %93 = vmatpush.msra.mxu0 %v44
    %94 = vmatpush.msra.mxu0 %v43
    %95 = vmatmul.f32.gmra.mxu0 %v77
    %v96 = vpop.f32.mrf.mxu0
    %v97 = vadd.f32 %v73, %v96
    %98 = vdwg.mxu0
    %v99 = vxor.u32 %v97, 2147483648
    %v100 = vmul.f32 %v99, 1.442695
    %v101 = vpow.pop %v100
    %v102 = vadd.f32 %v101, 1.0
    %v103 = vrcp.pop %v102
    %v104 = vmul.f32 %v102, %v103
    %v105 = vsub.f32 1.0, %v104
    %v106 = vmul.f32 %v103, %v105
    %v107 = vadd.f32 %v103, %v106
    %vm108 = vweird.f32 %v102
    %vm109 = vweird.f32 %v103
    %vm110 = vmor %vm108, %vm109
    %v111 = vsel %vm110, %v103, %v107
    %v112 = vand.u32 2147483647, %v102
    %vm113 = vcmp.eq.f32.partialorder %v112, 8.507059e+37
    %v114 = vand.u32 %v102, 2147483648
    %v115 = vor.u32 1.1754944e-38, %v114
    %v116 = vsel %vm113, %v115, %v111
    %v117 = vmul.f32 1.0, %v116
    %v118 = vtanh.pop %v97
    %120 = vrot.lane.b32.xlu0 %v41, 96
    %v121 = vpop.permute.xlu0 %120
    %v123 = vmul.f32 %v117, %v121
    %125 = vrot.lane.b32.xlu0 %v118, 64
    %v126 = vpop.permute.xlu0 %125
    %v128 = vmul.f32 %v117, %v126
    %130 = vrot.lane.b32.xlu0 %v128, 32
    %v131 = vpop.permute.xlu0 %130
    %v133 = vadd.f32 %v123, %v131
    %v134 = vtanh.pop %v133
    %136 = vrot.lane.b32.xlu0 %v134, 64
    %v137 = vpop.permute.xlu0 %136
    %v139 = vmul.f32 %v117, %v137
    %141 = vrot.lane.b32.xlu0 %v139, 64
    %v142 = vpop.permute.xlu0 %141
    %v144 = vsel %vm70, %v121, %v142
    %v146 = vperm.slane %v64, 0
    %v149 = vsel %vm75, %v144, 0
    %151 = vmatpush.msra.mxu0 0.0
    %152 = vmatpush.msra.mxu0 0.0
    %153 = vmatpush.msra.mxu0 0.0
    %154 = vmatpush.msra.mxu0 0.0
    %155 = vmatpush.msra.mxu0 0.0
    %156 = vmatpush.msra.mxu0 0.0
    %157 = vmatpush.msra.mxu0 0.0
    %158 = vmatpush.msra.mxu0 0.0
    %159 = vmatpush.msra.mxu0 %v58
    %160 = vmatpush.msra.mxu0 %v57
    %161 = vmatpush.msra.mxu0 %v56
    %162 = vmatpush.msra.mxu0 %v55
    %163 = vmatpush.msra.mxu0 %v54
    %164 = vmatpush.msra.mxu0 %v53
    %165 = vmatpush.msra.mxu0 %v52
    %166 = vmatpush.msra.mxu0 %v51
    %167 = vmatmul.f32.gmra.mxu0 %v149
    %v168 = vpop.f32.mrf.mxu0
    %v169 = vadd.f32 %v146, %v168
    %170 = vdwg.mxu0
    %v171 = vxor.u32 %v169, 2147483648
    %v172 = vmul.f32 %v171, 1.442695
    %v173 = vpow.pop %v172
    %v174 = vadd.f32 %v173, 1.0
    %v175 = vrcp.pop %v174
    %v176 = vmul.f32 %v174, %v175
    %v177 = vsub.f32 1.0, %v176
    %v178 = vmul.f32 %v175, %v177
    %v179 = vadd.f32 %v175, %v178
    %vm180 = vweird.f32 %v174
    %vm181 = vweird.f32 %v175
    %vm182 = vmor %vm180, %vm181
    %v183 = vsel %vm182, %v175, %v179
    %v184 = vand.u32 2147483647, %v174
    %vm185 = vcmp.eq.f32.partialorder %v184, 8.507059e+37
    %v186 = vand.u32 %v174, 2147483648
    %v187 = vor.u32 1.1754944e-38, %v186
    %v188 = vsel %vm185, %v187, %v183
    %v189 = vmul.f32 1.0, %v188
    %v190 = vtanh.pop %v169
    %191 = vrot.lane.b32.xlu0 %v41, 64
    %v192 = vpop.permute.xlu0 %191
    %v194 = vmul.f32 %v189, %v192
    %196 = vrot.lane.b32.xlu0 %v190, 64
    %v197 = vpop.permute.xlu0 %196
    %v199 = vmul.f32 %v189, %v197
    %201 = vrot.lane.b32.xlu0 %v199, 32
    %v202 = vpop.permute.xlu0 %201
    %v204 = vadd.f32 %v194, %v202
    %v205 = vtanh.pop %v204
    %207 = vrot.lane.b32.xlu0 %v205, 64
    %v208 = vpop.permute.xlu0 %207
    %v210 = vmul.f32 %v189, %v208
    %v212 = vperm.slane %v65, 0
    %215 = vrot.lane.b32.xlu0 %v210, 32
    %v216 = vpop.permute.xlu0 %215
    %v217 = vsel %vm70, %v216, 0
    %219 = vmatpush.msra.mxu0 0.0
    %220 = vmatpush.msra.mxu0 0.0
    %221 = vmatpush.msra.mxu0 0.0
    %222 = vmatpush.msra.mxu0 0.0
    %223 = vmatpush.msra.mxu0 0.0
    %224 = vmatpush.msra.mxu0 0.0
    %225 = vmatpush.msra.mxu0 0.0
    %226 = vmatpush.msra.mxu0 0.0
    %227 = vmatpush.msra.mxu0 0.0
    %228 = vmatpush.msra.mxu0 0.0
    %229 = vmatpush.msra.mxu0 0.0
    %230 = vmatpush.msra.mxu0 0.0
    %231 = vmatpush.msra.mxu0 %v62
    %232 = vmatpush.msra.mxu0 %v61
    %233 = vmatpush.msra.mxu0 %v60
    %234 = vmatpush.msra.mxu0 %v59
    %235 = vmatmul.f32.gmra.mxu0 %v217
    %v236 = vpop.f32.mrf.mxu0
    %v237 = vadd.f32 %v212, %v236
    %238 = vdwg.mxu0
    %v239 = vmax.f32 %v237, 0.0
    %240 = vst [vmem:[%s4] sm:$0x3] %v239
    %241 = vrot.lane.b32.xlu0 %v139, 32
    %v242 = vpop.permute.xlu0 %241
    %244 = vrot.lane.b32.xlu0 %v210, 64
    %v245 = vpop.permute.xlu0 %244
    %248 = vrot.lane.b32.xlu0 %v133, 32
    %v249 = vpop.permute.xlu0 %248
    %252 = vrot.lane.b32.xlu0 %v204, 64
    %v253 = vpop.permute.xlu0 %252
    %v255 = vsel %vm70, %v242, %v245
    %v256 = vsel %vm75, %v255, %v249
    %vm257 = vcmask 785408
    %v258 = vsel %vm257, %v256, %v253
    %259 = vst [vmem:[%s5] sm:$0x3] %v258
    // Predicated region
    $region26: #{lstm_forward.1} parent=1 // pred_check
      _
    $region27: #{lstm_forward.1} parent=1 // pred_check_branch
      %261 = sbr.rel (0) target = $region29
    $region28: #{lstm_forward.1} parent=1 // pred_region
      _
    $region29: #{lstm_forward.1} parent=1 // pred_fallthru
      _
    // Predicated region
    $region30: #{lstm_forward.1} parent=1 // pred_check
      _
    $region31: #{lstm_forward.1} parent=1 // pred_check_branch
      %263 = sbr.rel (0) target = $region33
    $region32: #{lstm_forward.1} parent=1 // pred_region
      _
    $region33: #{lstm_forward.1} parent=1 // pred_fallthru
      _
    // Predicated region
    $region34: #{lstm_forward.1} parent=1 // pred_check
      _
    $region35: #{lstm_forward.1} parent=1 // pred_check_branch
      %265 = sbr.rel (0) target = $region37
    $region36: #{lstm_forward.1} parent=1 // pred_region
      _
    $region37: #{lstm_forward.1} parent=1 // pred_fallthru
      _
    // Predicated region
    $region38: #{lstm_forward.1} parent=1 // pred_check
      _
    $region39: #{lstm_forward.1} parent=1 // pred_check_branch
      %267 = sbr.rel (0) target = $region41
    $region40: #{lstm_forward.1} parent=1 // pred_region
      _
    $region41: #{lstm_forward.1} parent=1 // pred_fallthru
      _
    %268 = vsyncpa [#allocation3], 1

</llo_original>
